<compile_context>
chip_gen: v6e
topology: v6e:2x2x1
jax: 0.10.0
libtpu: 0.0.40
codegen_flags: <defaults>
</compile_context>

<pallas_src>
import functools

import jax
import jax.numpy as jnp
from jax.experimental import pallas as pl
from jax.experimental.pallas import tpu as pltpu

# Below this output width the strided-W columns are assembled by direct lane
# concatenation (few pieces, maximally robust); above it we go through a
# minor-dim transpose so the subsample happens on the sublane axis (scales to
# large images, XLU has slack in this HBM-bound kernel).
_SMALL_LANE_SUBSAMPLE = 16


def _subsample_rows(x, stride, out_len, axis):
    """x[..., ::stride, ...][:out_len] along `axis`, built from static slices
    + concatenate only (no strided vector slices -> robust Mosaic lowering)."""
    if stride == 1:
        return x
    pieces = []
    for i in range(out_len):
        idx = [slice(None)] * x.ndim
        idx[axis] = slice(i * stride, i * stride + 1)
        pieces.append(x[tuple(idx)])
    return jnp.concatenate(pieces, axis=axis)


def _pool_kernel(x_ref, o_ref, *, kh, kw, stride, oh, ow, mode):
    # x_ref: (CT, H, W) native-NCHW block (W on lanes, H on sublanes, channel
    # images on the leading dim); o_ref: (CT, OH, OW).
    _, h, w = x_ref.shape
    dh_n = h - kh + 1           # dense (stride-1) output extents
    dw_n = w - kw + 1
    acc_f32 = (mode == 'avg')   # accumulate averages in f32

    acc = None
    # Static unrolled window loop.  Each tap is a plain window read from the
    # VMEM ref, so only one window-sized temporary is live at a time (bounds
    # VMEM pressure); low-precision avg upcasts per tap, not per block.
    for dh in range(kh):
        for dw in range(kw):
            win = x_ref[:, dh:dh + dh_n, dw:dw + dw_n]
            if acc_f32 and win.dtype != jnp.float32:
                win = win.astype(jnp.float32)
            if acc is None:
                acc = win
            elif mode == 'max':
                acc = jnp.maximum(acc, win)
            else:  # 'avg'
                acc = acc + win

    if stride > 1:
        # H subsample: rows live on the sublane axis -> cheap slice + concat.
        acc = _subsample_rows(acc, stride, oh, axis=1)
        if ow <= _SMALL_LANE_SUBSAMPLE:
            # Tiny OW: assemble the strided columns directly on the lane axis.
            acc = _subsample_rows(acc, stride, ow, axis=2)
        else:
            # Large OW: swap the two minor dims (batched XLU transpose, free
            # under HBM slack), subsample on sublanes, swap back.
            acc = jnp.swapaxes(acc, 1, 2)
            acc = _subsample_rows(acc, stride, ow, axis=1)
            acc = jnp.swapaxes(acc, 1, 2)

    if mode == 'avg':
        acc = acc * (1.0 / float(kh * kw))

    o_ref[...] = acc.astype(o_ref.dtype)


def _tpu_vmem_and_cores():
    """Generation-aware VMEM capacity and TensorCore count (robust fallbacks)."""
    vmem_cap = 64 * 1024 * 1024   # conservative default (v7x per-TC VMEM)
    num_cores = 1
    try:
        info = pltpu.get_tpu_info()
        cap = getattr(info, 'vmem_capacity_bytes', None)
        if cap:
            vmem_cap = int(cap)
        for name in ('num_cores', 'cores_per_chip', 'num_tensorcores',
                     'tensorcore_count'):
            v = getattr(info, name, None)
            if v:
                num_cores = int(v)
                break
    except Exception:
        pass
    if num_cores == 1:
        try:
            v = getattr(jax.devices()[0], 'num_cores', None)
            if v:
                num_cores = int(v)
        except Exception:
            pass
    return vmem_cap, num_cores


def pool2d(x, size=(2, 2), mode='max', stride=1):
    """Pallas equivalent of Pool2D.forward.  x is NCHW; dtype is preserved."""
    assert mode in ('max', 'avg')
    n, c, h, w = x.shape
    kh, kw = size
    assert h >= kh and w >= kw and stride >= 1
    if mode == 'avg':
        # Integer averages would truncate on the cast back; require floats.
        assert jnp.issubdtype(x.dtype, jnp.floating), \
            "avg pooling expects a floating dtype"
    oh = (h - kh) // stride + 1
    ow = (w - kw) // stride + 1
    nc = n * c

    vmem_cap, num_cores = _tpu_vmem_and_cores()
    # ~40 MiB scoped limit on v7x (64 MiB VMEM), ~80 MiB on v5e/v6e (128 MiB).
    vmem_limit = min((vmem_cap * 5) // 8, 100 * 1024 * 1024)

    itemsize = jnp.dtype(x.dtype).itemsize
    # Per channel-image footprint: double-buffered input + output blocks plus
    # in-kernel temporaries (f32 acc, one window temp, subsample temps).
    per_img = ((2 * h * w + 2 * oh * ow) * itemsize
               + 2 * h * w * 4 + 2 * oh * ow * 4)
    budget = max(0, vmem_limit - (4 << 20))
    ct = max(1, min(nc, budget // max(1, per_img)))
    # Megacore: only split the grid on multi-TC chips (v7x), targeting an even
    # grid with >= 2 steps per core; single-TC v5e/v6e keep the largest block
    # the budget allows (fewer per-step overheads, no parallelism to gain).
    if num_cores > 1 and nc >= 2 * num_cores:
        ct = min(ct, max(1, nc // (2 * num_cores)))
    grid = (pl.cdiv(nc, ct),)

    # Metadata-only reshape: NCHW stays put in HBM; each (ct, H, W) block is a
    # contiguous HBM range (ideal DMA), and no transpose ever touches HBM.
    x3 = x.reshape(nc, h, w)

    kernel = functools.partial(_pool_kernel, kh=kh, kw=kw, stride=stride,
                               oh=oh, ow=ow, mode=mode)
    out3 = pl.pallas_call(
        kernel,
        out_shape=jax.ShapeDtypeStruct((nc, oh, ow), x.dtype),
        grid_spec=pltpu.PrefetchScalarGridSpec(
            num_scalar_prefetch=0,
            grid=grid,
            in_specs=[pl.BlockSpec((ct, h, w), lambda i: (i, 0, 0))],
            out_specs=pl.BlockSpec((ct, oh, ow), lambda i: (i, 0, 0)),
        ),
        compiler_params=pltpu.CompilerParams(
            dimension_semantics=("parallel",),
            vmem_limit_bytes=int(vmem_limit)),
    )(x3)
    # TODO(synk): if a single channel-image ever exceeds the VMEM budget
    # (h*w >~ 1.5M elements), add an H-tile grid axis with a (kh-1) halo.
    return out3.reshape(n, c, oh, ow)


def _pool2d_ref(x, size=(2, 2), mode='max', stride=1):
    """Pure-JAX reference mirroring the PyTorch loop semantics."""
    n, c, h, w = x.shape
    kh, kw = size
    oh = (h - kh) // stride + 1
    ow = (w - kw) // stride + 1
    out = jnp.zeros((n, c, oh, ow), jnp.float32)
    for i in range(oh):
        for j in range(ow):
            window = x[:, :, stride * i:stride * i + kh,
                          stride * j:stride * j + kw]
            if mode == 'max':
                out = out.at[:, :, i, j].set(window.max(axis=(2, 3)))
            else:
                out = out.at[:, :, i, j].set(window.mean(axis=(2, 3)))
    return out


if __name__ == "__main__":
    key = jax.random.PRNGKey(0)
    x = jax.random.normal(key, (2, 4, 16, 16), dtype=jnp.float32)

    # max pool, size (2,2), stride 1 (the module defaults)
    out_max = pool2d(x, size=(2, 2), mode='max', stride=1)
    jax.block_until_ready(out_max)
    ref_max = _pool2d_ref(x, size=(2, 2), mode='max', stride=1)
    assert out_max.shape == (2, 4, 15, 15)
    assert out_max.dtype == x.dtype
    assert jnp.allclose(out_max, ref_max, atol=1e-5, rtol=1e-5)

    # avg pool, stride 2
    out_avg = pool2d(x, size=(2, 2), mode='avg', stride=2)
    jax.block_until_ready(out_avg)
    ref_avg = _pool2d_ref(x, size=(2, 2), mode='avg', stride=2)
    assert out_avg.shape == (2, 4, 8, 8)
    assert out_avg.dtype == x.dtype
    assert jnp.allclose(out_avg, ref_avg, atol=1e-5, rtol=1e-5)

    # dtype preservation: bf16 in -> bf16 out (max pool just selects elements)
    xb = x.astype(jnp.bfloat16)
    out_b = pool2d(xb, size=(2, 2), mode='max', stride=1)
    jax.block_until_ready(out_b)
    assert out_b.dtype == jnp.bfloat16
    ref_b = _pool2d_ref(xb.astype(jnp.float32), size=(2, 2), mode='max',
                        stride=1)
    assert jnp.allclose(out_b.astype(jnp.float32), ref_b, atol=2e-2, rtol=2e-2)

    print("KERNEL_OK")
</pallas_src>

<mosaic_0001>
module attributes {stable_mosaic.version = 11 : i64} {
  func.func @_pool_kernel(%arg0: i32, %arg1: memref<8x16x16xf32, #tpu.memory_space<vmem>>, %arg2: memref<8x15x15xf32, #tpu.memory_space<vmem>>) attributes {dimension_semantics = [#tpu.dimension_semantics<parallel>], iteration_bounds = array<i64: 1>, scalar_prefetch = 0 : i64, scratch_operands = 0 : i64, tpu.core_type = #tpu.core_type<tc>, window_params = [{transform_indices = @transform_0, window_bounds = array<i64: 8, 16, 16>}, {transform_indices = @transform_1, window_bounds = array<i64: 8, 15, 15>}]} {
    %c0 = arith.constant 0 : index
    %c0_0 = arith.constant 0 : index
    %c0_1 = arith.constant 0 : index
    %0 = vector.load %arg1[%c0, %c0_0, %c0_1] : memref<8x16x16xf32, #tpu.memory_space<vmem>>, vector<8x15x15xf32>
    %c0_2 = arith.constant 0 : index
    %c0_3 = arith.constant 0 : index
    %c1 = arith.constant 1 : index
    %1 = vector.load %arg1[%c0_2, %c0_3, %c1] : memref<8x16x16xf32, #tpu.memory_space<vmem>>, vector<8x15x15xf32>
    %2 = arith.maximumf %0, %1 : vector<8x15x15xf32>
    %c0_4 = arith.constant 0 : index
    %c1_5 = arith.constant 1 : index
    %c0_6 = arith.constant 0 : index
    %3 = vector.load %arg1[%c0_4, %c1_5, %c0_6] : memref<8x16x16xf32, #tpu.memory_space<vmem>>, vector<8x15x15xf32>
    %4 = arith.maximumf %2, %3 : vector<8x15x15xf32>
    %c0_7 = arith.constant 0 : index
    %c1_8 = arith.constant 1 : index
    %c1_9 = arith.constant 1 : index
    %5 = vector.load %arg1[%c0_7, %c1_8, %c1_9] : memref<8x16x16xf32, #tpu.memory_space<vmem>>, vector<8x15x15xf32>
    %6 = arith.maximumf %4, %5 : vector<8x15x15xf32>
    %c0_10 = arith.constant 0 : index
    %c0_11 = arith.constant 0 : index
    %c0_12 = arith.constant 0 : index
    %7 = vector.load %arg2[%c0_10, %c0_11, %c0_12] : memref<8x15x15xf32, #tpu.memory_space<vmem>>, vector<8x15x15xf32>
    tpu.vector_store %arg2[%c0_10, %c0_11, %c0_12], %6 {strides = array<i32>} : memref<8x15x15xf32, #tpu.memory_space<vmem>>, vector<8x15x15xf32>,
    return
  }
  func.func @transform_0(%arg0: i32) -> (i32, i32, i32) {
    %c0_i32 = arith.constant 0 : i32
    %c0_i32_0 = arith.constant 0 : i32
    %c0_i32_1 = arith.constant 0 : i32
    return %arg0, %c0_i32, %c0_i32_0 : i32, i32, i32
  }
  func.func @transform_1(%arg0: i32) -> (i32, i32, i32) {
    %c0_i32 = arith.constant 0 : i32
    %c0_i32_0 = arith.constant 0 : i32
    %c0_i32_1 = arith.constant 0 : i32
    return %arg0, %c0_i32, %c0_i32_0 : i32, i32, i32
  }
}

</mosaic_0001>

<llo_original>
// kernel: tpu_custom_call.1
$region0: #{tpu_custom_call.1}
  #allocation0 [shape = 'u32[]', space=smem, size = 0x4, offset = 0x4, fixed_abs, tag = 'smem constant byte address 0x4 - core index']
  #allocation1 [shape = 'u32[144,128]{1,0:T(1,128)}', space=vmem, size = 0x12000, scoped, tag = 'internal scratch']
  %s0 = inlined_call_operand.hbm [shape: f32[8,16,16], index: 0, kind: input, shape index: {}]
  %s1 = inlined_call_operand.vmem [shape: f32[8,15,15], index: 1, kind: output, shape index: {}]
  %s2 = sld [smem:[#allocation0]]
  $region18: #{tpu_custom_call.1} parent=0
    _
  %s4 = ssub.s32 1, %s2
  %s5 = scalar_select 0, %s4, %s2
  $region1: #{tpu_custom_call.1} parent=0
    #allocation2 [shape = 'u8[65536]{0}', space=vmem, size = 0x10000, scoped, tag = 'input window, operand 0, single buffered']
    #allocation3 [shape = 's32[1]{0}', space=sflag, size = 0x4, scoped, tag = 'scoped memory for tpu_custom_call.1']
    %6 = vsyncpa [#allocation3], 0
    // Predicated region
    $region2: #{tpu_custom_call.1} parent=1 // pred_check
      _
    $region3: #{tpu_custom_call.1} parent=1 // pred_check_branch
      %8 = sbr.rel (0) target = $region5
    $region4: #{tpu_custom_call.1} parent=1 // pred_region
      %s10 = ssub.s32 2048, 2048
      %11 = vsyncadd [#allocation3], %s10
      %s12 = sshll.u32 [#allocation2], 4
      %s13 = int_to_ptr.vmem [resolvable:$true] %s12
      %18 = dma.hbm_to_vmem [thread:$0]  %s0, 2048, %s13, [#allocation3], 128, 128, 8
    $region5: #{tpu_custom_call.1} parent=1 // pred_fallthru
      _
    // Predicated region
    $region6: #{tpu_custom_call.1} parent=1 // pred_check
      _
    $region7: #{tpu_custom_call.1} parent=1 // pred_check_branch
      %20 = sbr.rel (0) target = $region9
    $region8: #{tpu_custom_call.1} parent=1 // pred_region
      %21 = dma.done [#allocation3], 2048
    $region9: #{tpu_custom_call.1} parent=1 // pred_fallthru
      _
    %v22 = vld [vmem:[#allocation2] sm:$0xff]
    %v23 = vld [vmem:[#allocation2 + $0x8] sm:$0x7f]
    %v24 = vld [vmem:[#allocation2 + $0x10] sm:$0xff]
    %v25 = vld [vmem:[#allocation2 + $0x18] sm:$0x7f]
    %v26 = vld [vmem:[#allocation2 + $0x20] sm:$0xff]
    %v27 = vld [vmem:[#allocation2 + $0x28] sm:$0x7f]
    %v28 = vld [vmem:[#allocation2 + $0x30] sm:$0xff]
    %v29 = vld [vmem:[#allocation2 + $0x38] sm:$0x7f]
    %v30 = vld [vmem:[#allocation2 + $0x40] sm:$0xff]
    %v31 = vld [vmem:[#allocation2 + $0x48] sm:$0x7f]
    %v32 = vld [vmem:[#allocation2 + $0x50] sm:$0xff]
    %v33 = vld [vmem:[#allocation2 + $0x58] sm:$0x7f]
    %v34 = vld [vmem:[#allocation2 + $0x60] sm:$0xff]
    %v35 = vld [vmem:[#allocation2 + $0x68] sm:$0x7f]
    %v36 = vld [vmem:[#allocation2 + $0x70] sm:$0xff]
    %v37 = vld [vmem:[#allocation2 + $0x78] sm:$0x7f]
    %54 = vrot.lane.b32.xlu0 %v22, 127
    %v55 = vpop.permute.xlu0 %54
    %56 = vrot.lane.b32.xlu0 %v23, 127
    %v57 = vpop.permute.xlu0 %56
    %58 = vrot.lane.b32.xlu0 %v24, 127
    %v59 = vpop.permute.xlu0 %58
    %60 = vrot.lane.b32.xlu0 %v25, 127
    %v61 = vpop.permute.xlu0 %60
    %62 = vrot.lane.b32.xlu0 %v26, 127
    %v63 = vpop.permute.xlu0 %62
    %64 = vrot.lane.b32.xlu0 %v27, 127
    %v65 = vpop.permute.xlu0 %64
    %66 = vrot.lane.b32.xlu0 %v28, 127
    %v67 = vpop.permute.xlu0 %66
    %68 = vrot.lane.b32.xlu0 %v29, 127
    %v69 = vpop.permute.xlu0 %68
    %70 = vrot.lane.b32.xlu0 %v30, 127
    %v71 = vpop.permute.xlu0 %70
    %72 = vrot.lane.b32.xlu0 %v31, 127
    %v73 = vpop.permute.xlu0 %72
    %74 = vrot.lane.b32.xlu0 %v32, 127
    %v75 = vpop.permute.xlu0 %74
    %76 = vrot.lane.b32.xlu0 %v33, 127
    %v77 = vpop.permute.xlu0 %76
    %78 = vrot.lane.b32.xlu0 %v34, 127
    %v79 = vpop.permute.xlu0 %78
    %80 = vrot.lane.b32.xlu0 %v35, 127
    %v81 = vpop.permute.xlu0 %80
    %82 = vrot.lane.b32.xlu0 %v36, 127
    %v83 = vpop.permute.xlu0 %82
    %84 = vrot.lane.b32.xlu0 %v37, 127
    %v85 = vpop.permute.xlu0 %84
    %v102 = vmax.f32 %v22, %v55
    %v103 = vmax.f32 %v23, %v57
    %v104 = vmax.f32 %v24, %v59
    %v105 = vmax.f32 %v25, %v61
    %v106 = vmax.f32 %v26, %v63
    %v107 = vmax.f32 %v27, %v65
    %v108 = vmax.f32 %v28, %v67
    %v109 = vmax.f32 %v29, %v69
    %v110 = vmax.f32 %v30, %v71
    %v111 = vmax.f32 %v31, %v73
    %v112 = vmax.f32 %v32, %v75
    %v113 = vmax.f32 %v33, %v77
    %v114 = vmax.f32 %v34, %v79
    %v115 = vmax.f32 %v35, %v81
    %v116 = vmax.f32 %v36, %v83
    %v117 = vmax.f32 %v37, %v85
    %v118 = vld [vmem:[#allocation2 + $0x1] sm:$0xff]
    %v119 = vld [vmem:[#allocation2 + $0x9] sm:$0x7f]
    %v120 = vld [vmem:[#allocation2 + $0x11] sm:$0xff]
    %v121 = vld [vmem:[#allocation2 + $0x19] sm:$0x7f]
    %v122 = vld [vmem:[#allocation2 + $0x21] sm:$0xff]
    %v123 = vld [vmem:[#allocation2 + $0x29] sm:$0x7f]
    %v124 = vld [vmem:[#allocation2 + $0x31] sm:$0xff]
    %v125 = vld [vmem:[#allocation2 + $0x39] sm:$0x7f]
    %v126 = vld [vmem:[#allocation2 + $0x41] sm:$0xff]
    %v127 = vld [vmem:[#allocation2 + $0x49] sm:$0x7f]
    %v128 = vld [vmem:[#allocation2 + $0x51] sm:$0xff]
    %v129 = vld [vmem:[#allocation2 + $0x59] sm:$0x7f]
    %v130 = vld [vmem:[#allocation2 + $0x61] sm:$0xff]
    %v131 = vld [vmem:[#allocation2 + $0x69] sm:$0x7f]
    %v132 = vld [vmem:[#allocation2 + $0x71] sm:$0xff]
    %v133 = vld [vmem:[#allocation2 + $0x79] sm:$0x7f]
    %v134 = vmax.f32 %v102, %v118
    %v135 = vmax.f32 %v103, %v119
    %v136 = vmax.f32 %v104, %v120
    %v137 = vmax.f32 %v105, %v121
    %v138 = vmax.f32 %v106, %v122
    %v139 = vmax.f32 %v107, %v123
    %v140 = vmax.f32 %v108, %v124
    %v141 = vmax.f32 %v109, %v125
    %v142 = vmax.f32 %v110, %v126
    %v143 = vmax.f32 %v111, %v127
    %v144 = vmax.f32 %v112, %v128
    %v145 = vmax.f32 %v113, %v129
    %v146 = vmax.f32 %v114, %v130
    %v147 = vmax.f32 %v115, %v131
    %v148 = vmax.f32 %v116, %v132
    %v149 = vmax.f32 %v117, %v133
    %166 = vrot.lane.b32.xlu0 %v118, 127
    %v167 = vpop.permute.xlu0 %166
    %168 = vrot.lane.b32.xlu0 %v119, 127
    %v169 = vpop.permute.xlu0 %168
    %170 = vrot.lane.b32.xlu0 %v120, 127
    %v171 = vpop.permute.xlu0 %170
    %172 = vrot.lane.b32.xlu0 %v121, 127
    %v173 = vpop.permute.xlu0 %172
    %174 = vrot.lane.b32.xlu0 %v122, 127
    %v175 = vpop.permute.xlu0 %174
    %176 = vrot.lane.b32.xlu0 %v123, 127
    %v177 = vpop.permute.xlu0 %176
    %178 = vrot.lane.b32.xlu0 %v124, 127
    %v179 = vpop.permute.xlu0 %178
    %180 = vrot.lane.b32.xlu0 %v125, 127
    %v181 = vpop.permute.xlu0 %180
    %182 = vrot.lane.b32.xlu0 %v126, 127
    %v183 = vpop.permute.xlu0 %182
    %184 = vrot.lane.b32.xlu0 %v127, 127
    %v185 = vpop.permute.xlu0 %184
    %186 = vrot.lane.b32.xlu0 %v128, 127
    %v187 = vpop.permute.xlu0 %186
    %188 = vrot.lane.b32.xlu0 %v129, 127
    %v189 = vpop.permute.xlu0 %188
    %190 = vrot.lane.b32.xlu0 %v130, 127
    %v191 = vpop.permute.xlu0 %190
    %192 = vrot.lane.b32.xlu0 %v131, 127
    %v193 = vpop.permute.xlu0 %192
    %194 = vrot.lane.b32.xlu0 %v132, 127
    %v195 = vpop.permute.xlu0 %194
    %196 = vrot.lane.b32.xlu0 %v133, 127
    %v197 = vpop.permute.xlu0 %196
    %v214 = vmax.f32 %v134, %v167
    %v215 = vmax.f32 %v135, %v169
    %v216 = vmax.f32 %v136, %v171
    %v217 = vmax.f32 %v137, %v173
    %v218 = vmax.f32 %v138, %v175
    %v219 = vmax.f32 %v139, %v177
    %v220 = vmax.f32 %v140, %v179
    %v221 = vmax.f32 %v141, %v181
    %v222 = vmax.f32 %v142, %v183
    %v223 = vmax.f32 %v143, %v185
    %v224 = vmax.f32 %v144, %v187
    %v225 = vmax.f32 %v145, %v189
    %v226 = vmax.f32 %v146, %v191
    %v227 = vmax.f32 %v147, %v193
    %v228 = vmax.f32 %v148, %v195
    %v229 = vmax.f32 %v149, %v197
    %vm230 = vcmask 121856
    %231 = vst.msk [vmem:[%s1] sm:$0xff] %vm230, %v214
    %vm232 = vcmask 120832
    %233 = vst.msk [vmem:[%s1 + $0x8] sm:$0x7f] %vm232, %v215
    %234 = vst.msk [vmem:[%s1 + $0x10] sm:$0xff] %vm230, %v216
    %235 = vst.msk [vmem:[%s1 + $0x18] sm:$0x7f] %vm232, %v217
    %236 = vst.msk [vmem:[%s1 + $0x20] sm:$0xff] %vm230, %v218
    %237 = vst.msk [vmem:[%s1 + $0x28] sm:$0x7f] %vm232, %v219
    %238 = vst.msk [vmem:[%s1 + $0x30] sm:$0xff] %vm230, %v220
    %239 = vst.msk [vmem:[%s1 + $0x38] sm:$0x7f] %vm232, %v221
    %240 = vst.msk [vmem:[%s1 + $0x40] sm:$0xff] %vm230, %v222
    %241 = vst.msk [vmem:[%s1 + $0x48] sm:$0x7f] %vm232, %v223
    %242 = vst.msk [vmem:[%s1 + $0x50] sm:$0xff] %vm230, %v224
    %243 = vst.msk [vmem:[%s1 + $0x58] sm:$0x7f] %vm232, %v225
    %244 = vst.msk [vmem:[%s1 + $0x60] sm:$0xff] %vm230, %v226
    %245 = vst.msk [vmem:[%s1 + $0x68] sm:$0x7f] %vm232, %v227
    %246 = vst.msk [vmem:[%s1 + $0x70] sm:$0xff] %vm230, %v228
    %247 = vst.msk [vmem:[%s1 + $0x78] sm:$0x7f] %vm232, %v229
    // Predicated region
    $region10: #{tpu_custom_call.1} parent=1 // pred_check
      _
    $region11: #{tpu_custom_call.1} parent=1 // pred_check_branch
      %249 = sbr.rel (0) target = $region13
    $region12: #{tpu_custom_call.1} parent=1 // pred_region
      _
    $region13: #{tpu_custom_call.1} parent=1 // pred_fallthru
      _
    // Predicated region
    $region14: #{tpu_custom_call.1} parent=1 // pred_check
      _
    $region15: #{tpu_custom_call.1} parent=1 // pred_check_branch
      %251 = sbr.rel (0) target = $region17
    $region16: #{tpu_custom_call.1} parent=1 // pred_region
      _
    $region17: #{tpu_custom_call.1} parent=1 // pred_fallthru
      _
    %252 = vsyncpa [#allocation3], 1

</llo_original>
